<compile_context>
chip_gen: v6e
topology: v6e:2x2x1
jax: 0.10.0
libtpu: 0.0.40
codegen_flags: <defaults>
</compile_context>

<pallas_src>
import functools

import jax
import jax.numpy as jnp
from jax.experimental import pallas as pl
from jax.experimental.pallas import tpu as pltpu


HIDDEN = 256
_LANE = 128
_MIB = 1 << 20


def _round_up(n, m):
    return (n + m - 1) // m * m


def _device_kind():
    try:
        return jax.devices()[0].device_kind.lower()
    except Exception:  # pragma: no cover - defensive only
        return ""


def _mlp_kernel(x_ref, w1_ref, b1_ref, w2_ref, b2_ref, w3_ref, b3_ref, o_ref):
    """lin1 -> tanh -> lin2 -> tanh -> lin3, fully fused per batch tile.

    MXU inputs use the weights' dtype (bf16 fast path / f32 debug path) with
    f32 accumulation (preferred_element_type). Bias-add + tanh run in the
    biases' dtype: bf16 on v6e/v7x, f32 on v5e (no bf16 VPU/EUP there).
    Rows past B in a ragged last block are garbage on read but row-independent
    and masked on writeback, so results are unaffected.
    """
    mm_dtype = w2_ref.dtype
    act_dtype = b1_ref.dtype

    x = x_ref[...].astype(mm_dtype)  # cast in-kernel: no padded/cast HBM copy of x
    h = jnp.dot(x, w1_ref[...], preferred_element_type=jnp.float32)
    h = jnp.tanh(h.astype(act_dtype) + b1_ref[...])
    h = jnp.dot(h.astype(mm_dtype), w2_ref[...], preferred_element_type=jnp.float32)
    h = jnp.tanh(h.astype(act_dtype) + b2_ref[...])
    out = jnp.dot(h.astype(mm_dtype), w3_ref[...], preferred_element_type=jnp.float32)
    o_ref[...] = (out + b3_ref[...]).astype(o_ref.dtype)


@functools.partial(jax.jit, static_argnames=("block_b", "use_bf16", "bf16_act"))
def small_pinn_net(x, params, block_b=4096, use_bf16=True, bf16_act=None):
    """Forward pass of SmallPinnNet.

    x: (B, F) float32
    params: dict with w1 (F,256), b1 (1,256), w2 (256,256), b2 (1,256),
            w3 (256,O), b3 (1,O)  -- weights already transposed to (in, out).
    block_b: batch rows per grid step (rounded to a 128-multiple, then clamped
             by VMEM budget and, on v7x, by a >=4-step grid for megacore).
    use_bf16: bf16 MXU inputs / f32 accumulation. This is the supported fast
              path (especially on v5e, where f32 matmul is multi-pass);
              use_bf16=False is a correctness/debug mode. If this forward is
              differentiated for PINN residuals and derivative accuracy
              matters, prefer use_bf16=False (or bf16_act=False) on v6e/v7x.
    bf16_act: run bias-add + tanh in bf16. Default: auto (v6e/v7x only).
    """
    B, F = x.shape
    O = params["w3"].shape[1]

    kind = _device_kind()
    is_v7x = "v7" in kind
    is_v6e = "v6" in kind
    if bf16_act is None:
        bf16_act = use_bf16 and (is_v6e or is_v7x)

    mm_dtype = jnp.bfloat16 if use_bf16 else jnp.float32
    act_dtype = jnp.bfloat16 if (use_bf16 and bf16_act) else jnp.float32
    mm_item = 2 if use_bf16 else 4
    act_item = 2 if (use_bf16 and bf16_act) else 4

    # ---- batch tile -------------------------------------------------------
    bb = max(_LANE, _round_up(block_b, _LANE))
    bb = min(bb, _round_up(B, _LANE))                      # never larger than needed
    if is_v7x and B > 2 * _LANE:
        # Keep >=4 "parallel" grid steps so both TensorCores get work.
        bb = min(bb, max(_LANE, _round_up(pl.cdiv(B, 4), _LANE)))

    # VMEM footprint: double-buffered x/out tiles + resident (double-buffered)
    # weights + ~3 live (bb, 256) activation slabs (counted conservatively as f32).
    weight_bytes = 2 * ((F * HIDDEN + HIDDEN * HIDDEN + HIDDEN * O) * mm_item
                        + 2 * HIDDEN * act_item + O * 4)
    per_row = 2 * F * 4 + 2 * O * 4 + 3 * HIDDEN * 4
    budget = (40 * _MIB) if is_v7x else (96 * _MIB)        # v7x: 64 MiB physical VMEM
    bb_cap = max(_LANE, (budget - weight_bytes) // per_row // _LANE * _LANE)
    bb = min(bb, bb_cap)

    grid = (pl.cdiv(B, bb),)
    footprint = weight_bytes + bb * per_row
    vmem_cap = (48 * _MIB) if is_v7x else (100 * _MIB)
    vmem_limit = int(min(vmem_cap, max(32 * _MIB, 2 * footprint)))

    # ---- operands (weights are tiny; casting them wrapper-side is negligible)
    w1 = params["w1"].astype(mm_dtype)
    w2 = params["w2"].astype(mm_dtype)
    w3 = params["w3"].astype(mm_dtype)
    b1 = params["b1"].astype(act_dtype)
    b2 = params["b2"].astype(act_dtype)
    b3 = params["b3"].astype(jnp.float32)

    # ---- advisory cost estimate (unpadded, real traffic) -------------------
    flops = 2 * B * (F * HIDDEN + HIDDEN * HIDDEN + HIDDEN * O)
    transcendentals = 2 * B * HIDDEN
    bytes_accessed = (B * F * 4 + B * O * 4
                      + (F * HIDDEN + HIDDEN * HIDDEN + HIDDEN * O) * mm_item
                      + 2 * HIDDEN * act_item + O * 4)

    # Constant (0,0) index map -> weight/bias tiles stay resident in VMEM.
    wspec = lambda shape: pl.BlockSpec(shape, lambda i: (0, 0))

    out = pl.pallas_call(
        _mlp_kernel,
        out_shape=jax.ShapeDtypeStruct((B, O), jnp.float32),
        grid_spec=pltpu.PrefetchScalarGridSpec(
            num_scalar_prefetch=0,
            grid=grid,
            in_specs=[
                pl.BlockSpec((bb, F), lambda i: (i, 0)),   # x tile (last dim == full F)
                wspec((F, HIDDEN)),                        # w1
                wspec((1, HIDDEN)),                        # b1
                wspec((HIDDEN, HIDDEN)),                   # w2
                wspec((1, HIDDEN)),                        # b2
                wspec((HIDDEN, O)),                        # w3 (last dim == full O)
                wspec((1, O)),                             # b3
            ],
            out_specs=pl.BlockSpec((bb, O), lambda i: (i, 0)),   # narrow, unpadded output
        ),
        compiler_params=pltpu.CompilerParams(
            dimension_semantics=("parallel",),
            vmem_limit_bytes=vmem_limit,
        ),
        cost_estimate=pl.CostEstimate(
            flops=flops,
            transcendentals=transcendentals,
            bytes_accessed=bytes_accessed,
        ),
    )(x, w1, b1, w2, b2, w3, b3)

    return out


def init_params(key, num_features, num_outputs):
    """Deterministic PyTorch-Linear-style init: U(-1/sqrt(fan_in), 1/sqrt(fan_in))."""
    def linear(k, fan_in, fan_out):
        kw, kb = jax.random.split(k)
        bound = 1.0 / jnp.sqrt(jnp.float32(fan_in))
        # stored as (in, out) == PyTorch weight.T
        w = jax.random.uniform(kw, (fan_in, fan_out), jnp.float32, -bound, bound)
        b = jax.random.uniform(kb, (1, fan_out), jnp.float32, -bound, bound)
        return w, b

    k1, k2, k3 = jax.random.split(key, 3)
    w1, b1 = linear(k1, num_features, HIDDEN)
    w2, b2 = linear(k2, HIDDEN, HIDDEN)
    w3, b3 = linear(k3, HIDDEN, num_outputs)
    return dict(w1=w1, b1=b1, w2=w2, b2=b2, w3=w3, b3=b3)


def reference_forward(x, p):
    h = jnp.tanh(x @ p["w1"] + p["b1"])
    h = jnp.tanh(h @ p["w2"] + p["b2"])
    return h @ p["w3"] + p["b3"]


if __name__ == "__main__":
    key = jax.random.PRNGKey(0)
    kx, kp = jax.random.split(key)

    batch, num_features, num_outputs = 8, 16, 8
    x = jax.random.normal(kx, (batch, num_features), jnp.float32)
    params = init_params(kp, num_features, num_outputs)

    ref = reference_forward(x, params)

    # f32 MXU path (debug/precision mode): must match the JAX reference tightly.
    out_f32 = jax.block_until_ready(small_pinn_net(x, params, use_bf16=False))
    assert out_f32.shape == (batch, num_outputs)
    assert jnp.allclose(out_f32, ref, atol=1e-5, rtol=1e-5), "f32 mismatch vs reference"

    # bf16-matmul fast path (default; f32 accumulation): looser tolerance.
    out_bf16 = jax.block_until_ready(small_pinn_net(x, params))
    assert out_bf16.shape == (batch, num_outputs)
    assert jnp.allclose(out_bf16, ref, atol=5e-2, rtol=5e-2), "bf16 mismatch vs reference"

    print("KERNEL_OK")
</pallas_src>

<mosaic_0001>
module attributes {stable_mosaic.version = 11 : i64} {
  func.func @_mlp_kernel(%arg0: i32, %arg1: memref<128x16xf32, #tpu.memory_space<vmem>>, %arg2: memref<16x256xf32, #tpu.memory_space<vmem>>, %arg3: memref<1x256xf32, #tpu.memory_space<vmem>>, %arg4: memref<256x256xf32, #tpu.memory_space<vmem>>, %arg5: memref<1x256xf32, #tpu.memory_space<vmem>>, %arg6: memref<256x8xf32, #tpu.memory_space<vmem>>, %arg7: memref<1x8xf32, #tpu.memory_space<vmem>>, %arg8: memref<128x8xf32, #tpu.memory_space<vmem>>) attributes {dimension_semantics = [#tpu.dimension_semantics<parallel>], iteration_bounds = array<i64: 1>, scalar_prefetch = 0 : i64, scratch_operands = 0 : i64, tpu.core_type = #tpu.core_type<tc>, window_params = [{transform_indices = @transform_0, window_bounds = array<i64: 128, 16>}, {pipeline_mode = #tpu.pipeline_mode<synchronous>, transform_indices = @transform_1, window_bounds = array<i64: 16, 256>}, {pipeline_mode = #tpu.pipeline_mode<synchronous>, transform_indices = @transform_2, window_bounds = array<i64: 1, 256>}, {pipeline_mode = #tpu.pipeline_mode<synchronous>, transform_indices = @transform_3, window_bounds = array<i64: 256, 256>}, {pipeline_mode = #tpu.pipeline_mode<synchronous>, transform_indices = @transform_4, window_bounds = array<i64: 1, 256>}, {pipeline_mode = #tpu.pipeline_mode<synchronous>, transform_indices = @transform_5, window_bounds = array<i64: 256, 8>}, {pipeline_mode = #tpu.pipeline_mode<synchronous>, transform_indices = @transform_6, window_bounds = array<i64: 1, 8>}, {transform_indices = @transform_7, window_bounds = array<i64: 128, 8>}]} {
    %c0 = arith.constant 0 : index
    %c0_0 = arith.constant 0 : index
    %0 = vector.load %arg1[%c0, %c0_0] : memref<128x16xf32, #tpu.memory_space<vmem>>, vector<128x16xf32>
    %c0_1 = arith.constant 0 : index
    %c0_2 = arith.constant 0 : index
    %1 = vector.load %arg2[%c0_1, %c0_2] : memref<16x256xf32, #tpu.memory_space<vmem>>, vector<16x256xf32>
    %cst = arith.constant dense<0.000000e+00> : vector<128x256xf32>
    %2 = tpu.matmul %0, %1, %cst {dimension_numbers = #tpu.dot_dimension_numbers<[1], [0], [0], [1], [0, 0, 1, 1], [], []>} : vector<128x16xf32>, vector<16x256xf32>, vector<128x256xf32> -> vector<128x256xf32>
    %c0_3 = arith.constant 0 : index
    %c0_4 = arith.constant 0 : index
    %3 = vector.load %arg3[%c0_3, %c0_4] : memref<1x256xf32, #tpu.memory_space<vmem>>, vector<1x256xf32>
    %4 = vector.broadcast %3 : vector<1x256xf32> to vector<128x256xf32>
    %5 = arith.addf %2, %4 : vector<128x256xf32>
    %6 = math.tanh %5 : vector<128x256xf32>
    %c0_5 = arith.constant 0 : index
    %c0_6 = arith.constant 0 : index
    %7 = vector.load %arg4[%c0_5, %c0_6] : memref<256x256xf32, #tpu.memory_space<vmem>>, vector<256x256xf32>
    %cst_7 = arith.constant dense<0.000000e+00> : vector<128x256xf32>
    %8 = tpu.matmul %6, %7, %cst_7 {dimension_numbers = #tpu.dot_dimension_numbers<[1], [0], [0], [1], [0, 0, 1, 1], [], []>} : vector<128x256xf32>, vector<256x256xf32>, vector<128x256xf32> -> vector<128x256xf32>
    %c0_8 = arith.constant 0 : index
    %c0_9 = arith.constant 0 : index
    %9 = vector.load %arg5[%c0_8, %c0_9] : memref<1x256xf32, #tpu.memory_space<vmem>>, vector<1x256xf32>
    %10 = vector.broadcast %9 : vector<1x256xf32> to vector<128x256xf32>
    %11 = arith.addf %8, %10 : vector<128x256xf32>
    %12 = math.tanh %11 : vector<128x256xf32>
    %c0_10 = arith.constant 0 : index
    %c0_11 = arith.constant 0 : index
    %13 = vector.load %arg6[%c0_10, %c0_11] : memref<256x8xf32, #tpu.memory_space<vmem>>, vector<256x8xf32>
    %cst_12 = arith.constant dense<0.000000e+00> : vector<128x8xf32>
    %14 = tpu.matmul %12, %13, %cst_12 {dimension_numbers = #tpu.dot_dimension_numbers<[1], [0], [0], [1], [0, 0, 1, 1], [], []>} : vector<128x256xf32>, vector<256x8xf32>, vector<128x8xf32> -> vector<128x8xf32>
    %c0_13 = arith.constant 0 : index
    %c0_14 = arith.constant 0 : index
    %15 = vector.load %arg7[%c0_13, %c0_14] : memref<1x8xf32, #tpu.memory_space<vmem>>, vector<1x8xf32>
    %16 = vector.broadcast %15 : vector<1x8xf32> to vector<128x8xf32>
    %17 = arith.addf %14, %16 : vector<128x8xf32>
    %c0_15 = arith.constant 0 : index
    %c0_16 = arith.constant 0 : index
    %18 = vector.load %arg8[%c0_15, %c0_16] : memref<128x8xf32, #tpu.memory_space<vmem>>, vector<128x8xf32>
    tpu.vector_store %arg8[%c0_15, %c0_16], %17 {strides = array<i32>} : memref<128x8xf32, #tpu.memory_space<vmem>>, vector<128x8xf32>,
    return
  }
  func.func @transform_0(%arg0: i32) -> (i32, i32) {
    %c0_i32 = arith.constant 0 : i32
    %c0_i32_0 = arith.constant 0 : i32
    return %arg0, %c0_i32 : i32, i32
  }
  func.func @transform_1(%arg0: i32) -> (i32, i32) {
    %c0_i32 = arith.constant 0 : i32
    %c0_i32_0 = arith.constant 0 : i32
    %c0_i32_1 = arith.constant 0 : i32
    return %c0_i32, %c0_i32_0 : i32, i32
  }
  func.func @transform_2(%arg0: i32) -> (i32, i32) {
    %c0_i32 = arith.constant 0 : i32
    %c0_i32_0 = arith.constant 0 : i32
    %c0_i32_1 = arith.constant 0 : i32
    return %c0_i32, %c0_i32_0 : i32, i32
  }
  func.func @transform_3(%arg0: i32) -> (i32, i32) {
    %c0_i32 = arith.constant 0 : i32
    %c0_i32_0 = arith.constant 0 : i32
    %c0_i32_1 = arith.constant 0 : i32
    return %c0_i32, %c0_i32_0 : i32, i32
  }
  func.func @transform_4(%arg0: i32) -> (i32, i32) {
    %c0_i32 = arith.constant 0 : i32
    %c0_i32_0 = arith.constant 0 : i32
    %c0_i32_1 = arith.constant 0 : i32
    return %c0_i32, %c0_i32_0 : i32, i32
  }
  func.func @transform_5(%arg0: i32) -> (i32, i32) {
    %c0_i32 = arith.constant 0 : i32
    %c0_i32_0 = arith.constant 0 : i32
    %c0_i32_1 = arith.constant 0 : i32
    return %c0_i32, %c0_i32_0 : i32, i32
  }
  func.func @transform_6(%arg0: i32) -> (i32, i32) {
    %c0_i32 = arith.constant 0 : i32
    %c0_i32_0 = arith.constant 0 : i32
    %c0_i32_1 = arith.constant 0 : i32
    return %c0_i32, %c0_i32_0 : i32, i32
  }
  func.func @transform_7(%arg0: i32) -> (i32, i32) {
    %c0_i32 = arith.constant 0 : i32
    %c0_i32_0 = arith.constant 0 : i32
    return %arg0, %c0_i32 : i32, i32
  }
}

</mosaic_0001>

<llo_original>
// kernel: small_pinn_net.1
$region0: #{small_pinn_net.1}
  #allocation0 [shape = 'u32[]', space=smem, size = 0x4, offset = 0x4, fixed_abs, tag = 'smem constant byte address 0x4 - core index']
  #allocation1 [shape = 'u32[144,128]{1,0:T(1,128)}', space=vmem, size = 0x12000, scoped, tag = 'internal scratch']
  %s0 = inlined_call_operand.vmem [shape: f32[8,16], index: 0, kind: input, shape index: {}]
  %s1 = inlined_call_operand.vmem [shape: f32[16,256], index: 1, kind: input, shape index: {}]
  %s2 = inlined_call_operand.vmem [shape: f32[1,256], index: 2, kind: input, shape index: {}]
  %s3 = inlined_call_operand.hbm [shape: f32[256,256], index: 3, kind: input, shape index: {}]
  %s4 = inlined_call_operand.vmem [shape: f32[1,256], index: 4, kind: input, shape index: {}]
  %s5 = inlined_call_operand.vmem [shape: f32[256,8], index: 5, kind: input, shape index: {}]
  %s6 = inlined_call_operand.vmem [shape: f32[1,8], index: 6, kind: input, shape index: {}]
  %s7 = inlined_call_operand.hbm [shape: f32[8,8], index: 7, kind: output, shape index: {}]
  %s8 = sld [smem:[#allocation0]]
  $region42: #{small_pinn_net.1} parent=0
    _
  %s10 = ssub.s32 1, %s8
  %s11 = scalar_select 0, %s10, %s8
  $region1: #{small_pinn_net.1} parent=0
    #allocation2 [shape = 'u8[262144]{0}', space=vmem, size = 0x40000, scoped, tag = 'input window, operand 3, single buffered']
    #allocation3 [shape = 's32[1]{0}', space=sflag, size = 0x4, scoped, tag = 'scoped memory for small_pinn_net.1']
    #allocation4 [shape = 's32[1]{0}', space=sflag, size = 0x4, scoped, tag = 'scoped memory for small_pinn_net.1']
    #allocation5 [shape = 'u8[65536]{0}', space=vmem, size = 0x10000, scoped, tag = 'output window, operand 0, single buffered']
    %12 = vsyncpa [#allocation3], 0
    %13 = vsyncpa [#allocation4], 0
    // Predicated region
    $region2: #{small_pinn_net.1} parent=1 // pred_check
      _
    $region3: #{small_pinn_net.1} parent=1 // pred_check_branch
      %15 = sbr.rel (0) target = $region5
    $region4: #{small_pinn_net.1} parent=1 // pred_region
      _
    $region5: #{small_pinn_net.1} parent=1 // pred_fallthru
      _
    // Predicated region
    $region6: #{small_pinn_net.1} parent=1 // pred_check
      _
    $region7: #{small_pinn_net.1} parent=1 // pred_check_branch
      %17 = sbr.rel (0) target = $region9
    $region8: #{small_pinn_net.1} parent=1 // pred_region
      _
    $region9: #{small_pinn_net.1} parent=1 // pred_fallthru
      _
    // Predicated region
    $region10: #{small_pinn_net.1} parent=1 // pred_check
      _
    $region11: #{small_pinn_net.1} parent=1 // pred_check_branch
      %19 = sbr.rel (0) target = $region13
    $region12: #{small_pinn_net.1} parent=1 // pred_region
      _
    $region13: #{small_pinn_net.1} parent=1 // pred_fallthru
      _
    // Predicated region
    $region14: #{small_pinn_net.1} parent=1 // pred_check
      _
    $region15: #{small_pinn_net.1} parent=1 // pred_check_branch
      %21 = sbr.rel (0) target = $region17
    $region16: #{small_pinn_net.1} parent=1 // pred_region
      %s23 = ssub.s32 8192, 8192
      %24 = vsyncadd [#allocation3], %s23
      %s25 = sshll.u32 [#allocation2], 4
      %s26 = int_to_ptr.vmem [resolvable:$true] %s25
      %31 = dma.hbm_to_vmem [thread:$0]  %s3, 8192, %s26, [#allocation3], 256, 256, 16
    $region17: #{small_pinn_net.1} parent=1 // pred_fallthru
      _
    // Predicated region
    $region18: #{small_pinn_net.1} parent=1 // pred_check
      _
    $region19: #{small_pinn_net.1} parent=1 // pred_check_branch
      %33 = sbr.rel (0) target = $region21
    $region20: #{small_pinn_net.1} parent=1 // pred_region
      _
    $region21: #{small_pinn_net.1} parent=1 // pred_fallthru
      _
    // Predicated region
    $region22: #{small_pinn_net.1} parent=1 // pred_check
      _
    $region23: #{small_pinn_net.1} parent=1 // pred_check_branch
      %35 = sbr.rel (0) target = $region25
    $region24: #{small_pinn_net.1} parent=1 // pred_region
      _
    $region25: #{small_pinn_net.1} parent=1 // pred_fallthru
      _
    // Predicated region
    $region26: #{small_pinn_net.1} parent=1 // pred_check
      _
    $region27: #{small_pinn_net.1} parent=1 // pred_check_branch
      %37 = sbr.rel (0) target = $region29
    $region28: #{small_pinn_net.1} parent=1 // pred_region
      _
    $region29: #{small_pinn_net.1} parent=1 // pred_fallthru
      _
    // Predicated region
    $region30: #{small_pinn_net.1} parent=1 // pred_check
      _
    $region31: #{small_pinn_net.1} parent=1 // pred_check_branch
      %39 = sbr.rel (0) target = $region33
    $region32: #{small_pinn_net.1} parent=1 // pred_region
      %40 = dma.done [#allocation3], 8192
    $region33: #{small_pinn_net.1} parent=1 // pred_fallthru
      _
    %v41 = vld [vmem:[%s0] sm:$0xff]
    %v42 = vld [vmem:[%s0 + $0x8] sm:$0xff]
    %v43 = vld [vmem:[%s0 + $0x10] sm:$0xff]
    %v44 = vld [vmem:[%s0 + $0x18] sm:$0xff]
    %v45 = vld [vmem:[%s0 + $0x20] sm:$0xff]
    %v46 = vld [vmem:[%s0 + $0x28] sm:$0xff]
    %v47 = vld [vmem:[%s0 + $0x30] sm:$0xff]
    %v48 = vld [vmem:[%s0 + $0x38] sm:$0xff]
    %v49 = vld [vmem:[%s0 + $0x40] sm:$0xff]
    %v50 = vld [vmem:[%s0 + $0x48] sm:$0xff]
    %v51 = vld [vmem:[%s0 + $0x50] sm:$0xff]
    %v52 = vld [vmem:[%s0 + $0x58] sm:$0xff]
    %v53 = vld [vmem:[%s0 + $0x60] sm:$0xff]
    %v54 = vld [vmem:[%s0 + $0x68] sm:$0xff]
    %v55 = vld [vmem:[%s0 + $0x70] sm:$0xff]
    %v56 = vld [vmem:[%s0 + $0x78] sm:$0xff]
    %v57 = vld [vmem:[%s1] sm:$0xff]
    %v58 = vld [vmem:[%s1 + $0x8] sm:$0xff]
    %v59 = vld [vmem:[%s1 + $0x10] sm:$0xff]
    %v60 = vld [vmem:[%s1 + $0x18] sm:$0xff]
    %v61 = vld [vmem:[%s2] sm:$0x3]
    %v63 = vlaneseq
    %v64 = vshrl.u32 %v63, 7
    %v65 = vsub.s32 0, %v64
    %v66 = vrot.slane %v61, %v65
    %v67 = vlaneseq
    %v68 = vshrl.u32 %v67, 7
    %v69 = vsub.s32 1, %v68
    %v70 = vrot.slane %v61, %v69
    %vm73 = vcmask 130048
    %v75 = vsel %vm73, %v41, 0
    %v78 = vsel %vm73, %v42, 0
    %v81 = vsel %vm73, %v43, 0
    %v84 = vsel %vm73, %v44, 0
    %v87 = vsel %vm73, %v45, 0
    %v90 = vsel %vm73, %v46, 0
    %v93 = vsel %vm73, %v47, 0
    %v96 = vsel %vm73, %v48, 0
    %v99 = vsel %vm73, %v49, 0
    %v102 = vsel %vm73, %v50, 0
    %v105 = vsel %vm73, %v51, 0
    %v108 = vsel %vm73, %v52, 0
    %v111 = vsel %vm73, %v53, 0
    %v114 = vsel %vm73, %v54, 0
    %v117 = vsel %vm73, %v55, 0
    %v120 = vsel %vm73, %v56, 0
    %122 = vmatprep.subr.mxu0 0.0
    %123 = vmatpush1.msra.mxu0 0.0
    %124 = vmatprep.subr.mxu0 0.0
    %125 = vmatpush1.msra.mxu0 0.0
    %126 = vmatprep.subr.mxu0 0.0
    %127 = vmatpush1.msra.mxu0 0.0
    %128 = vmatprep.subr.mxu0 0.0
    %129 = vmatpush1.msra.mxu0 0.0
    %130 = vmatprep.subr.mxu0 0.0
    %131 = vmatpush1.msra.mxu0 0.0
    %132 = vmatprep.subr.mxu0 0.0
    %133 = vmatpush1.msra.mxu0 0.0
    %134 = vmatprep.subr.mxu0 0.0
    %135 = vmatpush1.msra.mxu0 0.0
    %136 = vmatprep.subr.mxu0 0.0
    %137 = vmatpush1.msra.mxu0 0.0
    %138 = vmatprep.subr.mxu0 0.0
    %139 = vmatpush1.msra.mxu0 0.0
    %140 = vmatprep.subr.mxu0 0.0
    %141 = vmatpush1.msra.mxu0 0.0
    %142 = vmatprep.subr.mxu0 0.0
    %143 = vmatpush1.msra.mxu0 0.0
    %144 = vmatprep.subr.mxu0 0.0
    %145 = vmatpush1.msra.mxu0 0.0
    %146 = vmatprep.subr.mxu0 0.0
    %147 = vmatpush1.msra.mxu0 0.0
    %148 = vmatprep.subr.mxu0 0.0
    %149 = vmatpush1.msra.mxu0 0.0
    %150 = vmatprep.subr.mxu0 %v60
    %151 = vmatpush1.msra.mxu0 %v59
    %152 = vmatprep.subr.mxu0 %v58
    %153 = vmatpush1.msra.mxu0 %v57
    %154 = vmatprep.subr.mxu0 0.0
    %155 = vmatpush2.msra.mxu0 0.0
    %156 = vmatprep.subr.mxu0 0.0
    %157 = vmatpush2.msra.mxu0 0.0
    %158 = vmatprep.subr.mxu0 0.0
    %159 = vmatpush2.msra.mxu0 0.0
    %160 = vmatprep.subr.mxu0 0.0
    %161 = vmatpush2.msra.mxu0 0.0
    %162 = vmatprep.subr.mxu0 0.0
    %163 = vmatpush2.msra.mxu0 0.0
    %164 = vmatprep.subr.mxu0 0.0
    %165 = vmatpush2.msra.mxu0 0.0
    %166 = vmatprep.subr.mxu0 0.0
    %167 = vmatpush2.msra.mxu0 0.0
    %168 = vmatprep.subr.mxu0 0.0
    %169 = vmatpush2.msra.mxu0 0.0
    %170 = vmatprep.subr.mxu0 0.0
    %171 = vmatpush2.msra.mxu0 0.0
    %172 = vmatprep.subr.mxu0 0.0
    %173 = vmatpush2.msra.mxu0 0.0
    %174 = vmatprep.subr.mxu0 0.0
    %175 = vmatpush2.msra.mxu0 0.0
    %176 = vmatprep.subr.mxu0 0.0
    %177 = vmatpush2.msra.mxu0 0.0
    %178 = vmatprep.subr.mxu0 0.0
    %179 = vmatpush2.msra.mxu0 0.0
    %180 = vmatprep.subr.mxu0 0.0
    %181 = vmatpush2.msra.mxu0 0.0
    %182 = vmatprep.subr.mxu0 0.0
    %183 = vmatpush2.msra.mxu0 0.0
    %184 = vmatprep.subr.mxu0 0.0
    %185 = vmatpush2.msra.mxu0 0.0
    %186 = vmatprep.mubr.f32.mxu0 0.0
    %187 = vmatmul.mubr.f32.gmra.mxu0 %v75
    %v188 = vpop.f32.mrf.mxu0
    %v189 = vadd.f32 %v66, %v188
    %v190 = vpop.f32.mrf.mxu0
    %v191 = vadd.f32 %v70, %v190
    %192 = vmatprep.mubr.f32.mxu0 0.0
    %193 = vmatmul.mubr.f32.gmra.mxu0 %v78
    %v194 = vpop.f32.mrf.mxu0
    %v195 = vadd.f32 %v66, %v194
    %v196 = vpop.f32.mrf.mxu0
    %v197 = vadd.f32 %v70, %v196
    %198 = vmatprep.mubr.f32.mxu0 0.0
    %199 = vmatmul.mubr.f32.gmra.mxu0 %v81
    %v200 = vpop.f32.mrf.mxu0
    %v201 = vadd.f32 %v66, %v200
    %v202 = vpop.f32.mrf.mxu0
    %v203 = vadd.f32 %v70, %v202
    %204 = vmatprep.mubr.f32.mxu0 0.0
    %205 = vmatmul.mubr.f32.gmra.mxu0 %v84
    %v206 = vpop.f32.mrf.mxu0
    %v207 = vadd.f32 %v66, %v206
    %v208 = vpop.f32.mrf.mxu0
    %v209 = vadd.f32 %v70, %v208
    %210 = vmatprep.mubr.f32.mxu0 0.0
    %211 = vmatmul.mubr.f32.gmra.mxu0 %v87
    %v212 = vpop.f32.mrf.mxu0
    %v213 = vadd.f32 %v66, %v212
    %v214 = vpop.f32.mrf.mxu0
    %v215 = vadd.f32 %v70, %v214
    %216 = vmatprep.mubr.f32.mxu0 0.0
    %217 = vmatmul.mubr.f32.gmra.mxu0 %v90
    %v218 = vpop.f32.mrf.mxu0
    %v219 = vadd.f32 %v66, %v218
    %v220 = vpop.f32.mrf.mxu0
    %v221 = vadd.f32 %v70, %v220
    %222 = vmatprep.mubr.f32.mxu0 0.0
    %223 = vmatmul.mubr.f32.gmra.mxu0 %v93
    %v224 = vpop.f32.mrf.mxu0
    %v225 = vadd.f32 %v66, %v224
    %v226 = vpop.f32.mrf.mxu0
    %v227 = vadd.f32 %v70, %v226
    %228 = vmatprep.mubr.f32.mxu0 0.0
    %229 = vmatmul.mubr.f32.gmra.mxu0 %v96
    %v230 = vpop.f32.mrf.mxu0
    %v231 = vadd.f32 %v66, %v230
    %v232 = vpop.f32.mrf.mxu0
    %v233 = vadd.f32 %v70, %v232
    %234 = vmatprep.mubr.f32.mxu0 0.0
    %235 = vmatmul.mubr.f32.gmra.mxu0 %v99
    %v236 = vpop.f32.mrf.mxu0
    %v237 = vadd.f32 %v66, %v236
    %v238 = vpop.f32.mrf.mxu0
    %v239 = vadd.f32 %v70, %v238
    %240 = vmatprep.mubr.f32.mxu0 0.0
    %241 = vmatmul.mubr.f32.gmra.mxu0 %v102
    %v242 = vpop.f32.mrf.mxu0
    %v243 = vadd.f32 %v66, %v242
    %v244 = vpop.f32.mrf.mxu0
    %v245 = vadd.f32 %v70, %v244
    %246 = vmatprep.mubr.f32.mxu0 0.0
    %247 = vmatmul.mubr.f32.gmra.mxu0 %v105
    %v248 = vpop.f32.mrf.mxu0
    %v249 = vadd.f32 %v66, %v248
    %v250 = vpop.f32.mrf.mxu0
    %v251 = vadd.f32 %v70, %v250
    %252 = vmatprep.mubr.f32.mxu0 0.0
    %253 = vmatmul.mubr.f32.gmra.mxu0 %v108
    %v254 = vpop.f32.mrf.mxu0
    %v255 = vadd.f32 %v66, %v254
    %v256 = vpop.f32.mrf.mxu0
    %v257 = vadd.f32 %v70, %v256
    %258 = vmatprep.mubr.f32.mxu0 0.0
    %259 = vmatmul.mubr.f32.gmra.mxu0 %v111
    %v260 = vpop.f32.mrf.mxu0
    %v261 = vadd.f32 %v66, %v260
    %v262 = vpop.f32.mrf.mxu0
    %v263 = vadd.f32 %v70, %v262
    %264 = vmatprep.mubr.f32.mxu0 0.0
    %265 = vmatmul.mubr.f32.gmra.mxu0 %v114
    %v266 = vpop.f32.mrf.mxu0
    %v267 = vadd.f32 %v66, %v266
    %v268 = vpop.f32.mrf.mxu0
    %v269 = vadd.f32 %v70, %v268
    %270 = vmatprep.mubr.f32.mxu0 0.0
    %271 = vmatmul.mubr.f32.gmra.mxu0 %v117
    %v272 = vpop.f32.mrf.mxu0
    %v273 = vadd.f32 %v66, %v272
    %v274 = vpop.f32.mrf.mxu0
    %v275 = vadd.f32 %v70, %v274
    %276 = vmatprep.mubr.f32.mxu0 0.0
    %277 = vmatmul.mubr.f32.gmra.mxu0 %v120
    %v278 = vpop.f32.mrf.mxu0
    %v279 = vadd.f32 %v66, %v278
    %v280 = vpop.f32.mrf.mxu0
    %v281 = vadd.f32 %v70, %v280
    %282 = vdwg.mxu0
    %v283 = vtanh.pop %v189
    %v284 = vtanh.pop %v191
    %v285 = vtanh.pop %v195
    %v286 = vtanh.pop %v197
    %v287 = vtanh.pop %v201
    %v288 = vtanh.pop %v203
    %v289 = vtanh.pop %v207
    %v290 = vtanh.pop %v209
    %v291 = vtanh.pop %v213
    %v292 = vtanh.pop %v215
    %v293 = vtanh.pop %v219
    %v294 = vtanh.pop %v221
    %v295 = vtanh.pop %v225
    %v296 = vtanh.pop %v227
    %v297 = vtanh.pop %v231
    %v298 = vtanh.pop %v233
    %v299 = vtanh.pop %v237
    %v300 = vtanh.pop %v239
    %v301 = vtanh.pop %v243
    %v302 = vtanh.pop %v245
    %v303 = vtanh.pop %v249
    %v304 = vtanh.pop %v251
    %v305 = vtanh.pop %v255
    %v306 = vtanh.pop %v257
    %v307 = vtanh.pop %v261
    %v308 = vtanh.pop %v263
    %v309 = vtanh.pop %v267
    %v310 = vtanh.pop %v269
    %v311 = vtanh.pop %v273
    %v312 = vtanh.pop %v275
    %v313 = vtanh.pop %v279
    %v314 = vtanh.pop %v281
    %v315 = vld [vmem:[#allocation2] sm:$0xff]
    %v316 = vld [vmem:[#allocation2 + $0x8] sm:$0xff]
    %v317 = vld [vmem:[#allocation2 + $0x10] sm:$0xff]
    %v318 = vld [vmem:[#allocation2 + $0x18] sm:$0xff]
    %v319 = vld [vmem:[#allocation2 + $0x20] sm:$0xff]
    %v320 = vld [vmem:[#allocation2 + $0x28] sm:$0xff]
    %v321 = vld [vmem:[#allocation2 + $0x30] sm:$0xff]
    %v322 = vld [vmem:[#allocation2 + $0x38] sm:$0xff]
    %v323 = vld [vmem:[#allocation2 + $0x40] sm:$0xff]
    %v324 = vld [vmem:[#allocation2 + $0x48] sm:$0xff]
    %v325 = vld [vmem:[#allocation2 + $0x50] sm:$0xff]
    %v326 = vld [vmem:[#allocation2 + $0x58] sm:$0xff]
    %v327 = vld [vmem:[#allocation2 + $0x60] sm:$0xff]
    %v328 = vld [vmem:[#allocation2 + $0x68] sm:$0xff]
    %v329 = vld [vmem:[#allocation2 + $0x70] sm:$0xff]
    %v330 = vld [vmem:[#allocation2 + $0x78] sm:$0xff]
    %v331 = vld [vmem:[#allocation2 + $0x80] sm:$0xff]
    %v332 = vld [vmem:[#allocation2 + $0x88] sm:$0xff]
    %v333 = vld [vmem:[#allocation2 + $0x90] sm:$0xff]
    %v334 = vld [vmem:[#allocation2 + $0x98] sm:$0xff]
    %v335 = vld [vmem:[#allocation2 + $0xa0] sm:$0xff]
    %v336 = vld [vmem:[#allocation2 + $0xa8] sm:$0xff]
    %v337 = vld [vmem:[#allocation2 + $0xb0] sm:$0xff]
    %v338 = vld [vmem:[#allocation2 + $0xb8] sm:$0xff]
    %v339 = vld [vmem:[#allocation2 + $0xc0] sm:$0xff]
    %v340 = vld [vmem:[#allocation2 + $0xc8] sm:$0xff]
    %v341 = vld [vmem:[#allocation2 + $0xd0] sm:$0xff]
    %v342 = vld [vmem:[#allocation2 + $0xd8] sm:$0xff]
    %v343 = vld [vmem:[#allocation2 + $0xe0] sm:$0xff]
    %v344 = vld [vmem:[#allocation2 + $0xe8] sm:$0xff]
    %v345 = vld [vmem:[#allocation2 + $0xf0] sm:$0xff]
    %v346 = vld [vmem:[#allocation2 + $0xf8] sm:$0xff]
    %v347 = vld [vmem:[#allocation2 + $0x100] sm:$0xff]
    %v348 = vld [vmem:[#allocation2 + $0x108] sm:$0xff]
    %v349 = vld [vmem:[#allocation2 + $0x110] sm:$0xff]
    %v350 = vld [vmem:[#allocation2 + $0x118] sm:$0xff]
    %v351 = vld [vmem:[#allocation2 + $0x120] sm:$0xff]
    %v352 = vld [vmem:[#allocation2 + $0x128] sm:$0xff]
    %v353 = vld [vmem:[#allocation2 + $0x130] sm:$0xff]
    %v354 = vld [vmem:[#allocation2 + $0x138] sm:$0xff]
    %v355 = vld [vmem:[#allocation2 + $0x140] sm:$0xff]
    %v356 = vld [vmem:[#allocation2 + $0x148] sm:$0xff]
    %v357 = vld [vmem:[#allocation2 + $0x150] sm:$0xff]
    %v358 = vld [vmem:[#allocation2 + $0x158] sm:$0xff]
    %v359 = vld [vmem:[#allocation2 + $0x160] sm:$0xff]
    %v360 = vld [vmem:[#allocation2 + $0x168] sm:$0xff]
    %v361 = vld [vmem:[#allocation2 + $0x170] sm:$0xff]
    %v362 = vld [vmem:[#allocation2 + $0x178] sm:$0xff]
    %v363 = vld [vmem:[#allocation2 + $0x180] sm:$0xff]
    %v364 = vld [vmem:[#allocation2 + $0x188] sm:$0xff]
    %v365 = vld [vmem:[#allocation2 + $0x190] sm:$0xff]
    %v366 = vld [vmem:[#allocation2 + $0x198] sm:$0xff]
    %v367 = vld [vmem:[#allocation2 + $0x1a0] sm:$0xff]
    %v368 = vld [vmem:[#allocation2 + $0x1a8] sm:$0xff]
    %v369 = vld [vmem:[#allocation2 + $0x1b0] sm:$0xff]
    %v370 = vld [vmem:[#allocation2 + $0x1b8] sm:$0xff]
    %v371 = vld [vmem:[#allocation2 + $0x1c0] sm:$0xff]
    %v372 = vld [vmem:[#allocation2 + $0x1c8] sm:$0xff]
    %v373 = vld [vmem:[#allocation2 + $0x1d0] sm:$0xff]
    %v374 = vld [vmem:[#allocation2 + $0x1d8] sm:$0xff]
    %v375 = vld [vmem:[#allocation2 + $0x1e0] sm:$0xff]
    %v376 = vld [vmem:[#allocation2 + $0x1e8] sm:$0xff]
    %v377 = vld [vmem:[#allocation2 + $0x1f0] sm:$0xff]
    %v378 = vld [vmem:[#allocation2 + $0x1f8] sm:$0xff]
    %v379 = vld [vmem:[%s4] sm:$0x3]
    %v381 = vlaneseq
    %v382 = vshrl.u32 %v381, 7
    %v383 = vsub.s32 0, %v382
    %v384 = vrot.slane %v379, %v383
    %v385 = vlaneseq
    %v386 = vshrl.u32 %v385, 7
    %v387 = vsub.s32 1, %v386
    %v388 = vrot.slane %v379, %v387
    %391 = vmatprep.subr.mxu0 %v346
    %392 = vmatpush1.msra.mxu0 %v345
    %393 = vmatprep.subr.mxu0 %v344
    %394 = vmatpush1.msra.mxu0 %v343
    %395 = vmatprep.subr.mxu0 %v342
    %396 = vmatpush1.msra.mxu0 %v341
    %397 = vmatprep.subr.mxu0 %v340
    %398 = vmatpush1.msra.mxu0 %v339
    %399 = vmatprep.subr.mxu0 %v338
    %400 = vmatpush1.msra.mxu0 %v337
    %401 = vmatprep.subr.mxu0 %v336
    %402 = vmatpush1.msra.mxu0 %v335
    %403 = vmatprep.subr.mxu0 %v334
    %404 = vmatpush1.msra.mxu0 %v333
    %405 = vmatprep.subr.mxu0 %v332
    %406 = vmatpush1.msra.mxu0 %v331
    %407 = vmatprep.subr.mxu0 %v330
    %408 = vmatpush1.msra.mxu0 %v329
    %409 = vmatprep.subr.mxu0 %v328
    %410 = vmatpush1.msra.mxu0 %v327
    %411 = vmatprep.subr.mxu0 %v326
    %412 = vmatpush1.msra.mxu0 %v325
    %413 = vmatprep.subr.mxu0 %v324
    %414 = vmatpush1.msra.mxu0 %v323
    %415 = vmatprep.subr.mxu0 %v322
    %416 = vmatpush1.msra.mxu0 %v321
    %417 = vmatprep.subr.mxu0 %v320
    %418 = vmatpush1.msra.mxu0 %v319
    %419 = vmatprep.subr.mxu0 %v318
    %420 = vmatpush1.msra.mxu0 %v317
    %421 = vmatprep.subr.mxu0 %v316
    %422 = vmatpush1.msra.mxu0 %v315
    %423 = vmatprep.subr.mxu0 %v378
    %424 = vmatpush2.msra.mxu0 %v377
    %425 = vmatprep.subr.mxu0 %v376
    %426 = vmatpush2.msra.mxu0 %v375
    %427 = vmatprep.subr.mxu0 %v374
    %428 = vmatpush2.msra.mxu0 %v373
    %429 = vmatprep.subr.mxu0 %v372
    %430 = vmatpush2.msra.mxu0 %v371
    %431 = vmatprep.subr.mxu0 %v370
    %432 = vmatpush2.msra.mxu0 %v369
    %433 = vmatprep.subr.mxu0 %v368
    %434 = vmatpush2.msra.mxu0 %v367
    %435 = vmatprep.subr.mxu0 %v366
    %436 = vmatpush2.msra.mxu0 %v365
    %437 = vmatprep.subr.mxu0 %v364
    %438 = vmatpush2.msra.mxu0 %v363
    %439 = vmatprep.subr.mxu0 %v362
    %440 = vmatpush2.msra.mxu0 %v361
    %441 = vmatprep.subr.mxu0 %v360
    %442 = vmatpush2.msra.mxu0 %v359
    %443 = vmatprep.subr.mxu0 %v358
    %444 = vmatpush2.msra.mxu0 %v357
    %445 = vmatprep.subr.mxu0 %v356
    %446 = vmatpush2.msra.mxu0 %v355
    %447 = vmatprep.subr.mxu0 %v354
    %448 = vmatpush2.msra.mxu0 %v353
    %449 = vmatprep.subr.mxu0 %v352
    %450 = vmatpush2.msra.mxu0 %v351
    %451 = vmatprep.subr.mxu0 %v350
    %452 = vmatpush2.msra.mxu0 %v349
    %453 = vmatprep.subr.mxu0 %v348
    %454 = vmatpush2.msra.mxu0 %v347
    %455 = vmatprep.mubr.f32.mxu0 %v284
    %456 = vmatmul.mubr.f32.gmra.mxu0 %v283
    %v457 = vpop.f32.mrf.mxu0
    %v458 = vadd.f32 %v384, %v457
    %v459 = vpop.f32.mrf.mxu0
    %v460 = vadd.f32 %v388, %v459
    %461 = vmatprep.mubr.f32.mxu0 %v286
    %462 = vmatmul.mubr.f32.gmra.mxu0 %v285
    %v463 = vpop.f32.mrf.mxu0
    %v464 = vadd.f32 %v384, %v463
    %v465 = vpop.f32.mrf.mxu0
    %v466 = vadd.f32 %v388, %v465
    %467 = vmatprep.mubr.f32.mxu0 %v288
    %468 = vmatmul.mubr.f32.gmra.mxu0 %v287
    %v469 = vpop.f32.mrf.mxu0
    %v470 = vadd.f32 %v384, %v469
    %v471 = vpop.f32.mrf.mxu0
    %v472 = vadd.f32 %v388, %v471
    %473 = vmatprep.mubr.f32.mxu0 %v290
    %474 = vmatmul.mubr.f32.gmra.mxu0 %v289
    %v475 = vpop.f32.mrf.mxu0
    %v476 = vadd.f32 %v384, %v475
    %v477 = vpop.f32.mrf.mxu0
    %v478 = vadd.f32 %v388, %v477
    %479 = vmatprep.mubr.f32.mxu0 %v292
    %480 = vmatmul.mubr.f32.gmra.mxu0 %v291
    %v481 = vpop.f32.mrf.mxu0
    %v482 = vadd.f32 %v384, %v481
    %v483 = vpop.f32.mrf.mxu0
    %v484 = vadd.f32 %v388, %v483
    %485 = vmatprep.mubr.f32.mxu0 %v294
    %486 = vmatmul.mubr.f32.gmra.mxu0 %v293
    %v487 = vpop.f32.mrf.mxu0
    %v488 = vadd.f32 %v384, %v487
    %v489 = vpop.f32.mrf.mxu0
    %v490 = vadd.f32 %v388, %v489
    %491 = vmatprep.mubr.f32.mxu0 %v296
    %492 = vmatmul.mubr.f32.gmra.mxu0 %v295
    %v493 = vpop.f32.mrf.mxu0
    %v494 = vadd.f32 %v384, %v493
    %v495 = vpop.f32.mrf.mxu0
    %v496 = vadd.f32 %v388, %v495
    %497 = vmatprep.mubr.f32.mxu0 %v298
    %498 = vmatmul.mubr.f32.gmra.mxu0 %v297
    %v499 = vpop.f32.mrf.mxu0
    %v500 = vadd.f32 %v384, %v499
    %v501 = vpop.f32.mrf.mxu0
    %v502 = vadd.f32 %v388, %v501
    %503 = vmatprep.mubr.f32.mxu0 %v300
    %504 = vmatmul.mubr.f32.gmra.mxu0 %v299
    %v505 = vpop.f32.mrf.mxu0
    %v506 = vadd.f32 %v384, %v505
    %v507 = vpop.f32.mrf.mxu0
    %v508 = vadd.f32 %v388, %v507
    %509 = vmatprep.mubr.f32.mxu0 %v302
    %510 = vmatmul.mubr.f32.gmra.mxu0 %v301
    %v511 = vpop.f32.mrf.mxu0
    %v512 = vadd.f32 %v384, %v511
    %v513 = vpop.f32.mrf.mxu0
    %v514 = vadd.f32 %v388, %v513
    %515 = vmatprep.mubr.f32.mxu0 %v304
    %516 = vmatmul.mubr.f32.gmra.mxu0 %v303
    %v517 = vpop.f32.mrf.mxu0
    %v518 = vadd.f32 %v384, %v517
    %v519 = vpop.f32.mrf.mxu0
    %v520 = vadd.f32 %v388, %v519
    %521 = vmatprep.mubr.f32.mxu0 %v306
    %522 = vmatmul.mubr.f32.gmra.mxu0 %v305
    %v523 = vpop.f32.mrf.mxu0
    %v524 = vadd.f32 %v384, %v523
    %v525 = vpop.f32.mrf.mxu0
    %v526 = vadd.f32 %v388, %v525
    %527 = vmatprep.mubr.f32.mxu0 %v308
    %528 = vmatmul.mubr.f32.gmra.mxu0 %v307
    %v529 = vpop.f32.mrf.mxu0
    %v530 = vadd.f32 %v384, %v529
    %v531 = vpop.f32.mrf.mxu0
    %v532 = vadd.f32 %v388, %v531
    %533 = vmatprep.mubr.f32.mxu0 %v310
    %534 = vmatmul.mubr.f32.gmra.mxu0 %v309
    %v535 = vpop.f32.mrf.mxu0
    %v536 = vadd.f32 %v384, %v535
    %v537 = vpop.f32.mrf.mxu0
    %v538 = vadd.f32 %v388, %v537
    %539 = vmatprep.mubr.f32.mxu0 %v312
    %540 = vmatmul.mubr.f32.gmra.mxu0 %v311
    %v541 = vpop.f32.mrf.mxu0
    %v542 = vadd.f32 %v384, %v541
    %v543 = vpop.f32.mrf.mxu0
    %v544 = vadd.f32 %v388, %v543
    %545 = vmatprep.mubr.f32.mxu0 %v314
    %546 = vmatmul.mubr.f32.gmra.mxu0 %v313
    %v547 = vpop.f32.mrf.mxu0
    %v548 = vadd.f32 %v384, %v547
    %v549 = vpop.f32.mrf.mxu0
    %v550 = vadd.f32 %v388, %v549
    %551 = vdwg.mxu0
    %v552 = vtanh.pop %v458
    %v553 = vtanh.pop %v460
    %v554 = vtanh.pop %v464
    %v555 = vtanh.pop %v466
    %v556 = vtanh.pop %v470
    %v557 = vtanh.pop %v472
    %v558 = vtanh.pop %v476
    %v559 = vtanh.pop %v478
    %v560 = vtanh.pop %v482
    %v561 = vtanh.pop %v484
    %v562 = vtanh.pop %v488
    %v563 = vtanh.pop %v490
    %v564 = vtanh.pop %v494
    %v565 = vtanh.pop %v496
    %v566 = vtanh.pop %v500
    %v567 = vtanh.pop %v502
    %v568 = vtanh.pop %v506
    %v569 = vtanh.pop %v508
    %v570 = vtanh.pop %v512
    %v571 = vtanh.pop %v514
    %v572 = vtanh.pop %v518
    %v573 = vtanh.pop %v520
    %v574 = vtanh.pop %v524
    %v575 = vtanh.pop %v526
    %v576 = vtanh.pop %v530
    %v577 = vtanh.pop %v532
    %v578 = vtanh.pop %v536
    %v579 = vtanh.pop %v538
    %v580 = vtanh.pop %v542
    %v581 = vtanh.pop %v544
    %v582 = vtanh.pop %v548
    %v583 = vtanh.pop %v550
    %v584 = vld [vmem:[%s5] sm:$0xff]
    %v585 = vld [vmem:[%s5 + $0x8] sm:$0xff]
    %v586 = vld [vmem:[%s5 + $0x10] sm:$0xff]
    %v587 = vld [vmem:[%s5 + $0x18] sm:$0xff]
    %v588 = vld [vmem:[%s5 + $0x20] sm:$0xff]
    %v589 = vld [vmem:[%s5 + $0x28] sm:$0xff]
    %v590 = vld [vmem:[%s5 + $0x30] sm:$0xff]
    %v591 = vld [vmem:[%s5 + $0x38] sm:$0xff]
    %v592 = vld [vmem:[%s5 + $0x40] sm:$0xff]
    %v593 = vld [vmem:[%s5 + $0x48] sm:$0xff]
    %v594 = vld [vmem:[%s5 + $0x50] sm:$0xff]
    %v595 = vld [vmem:[%s5 + $0x58] sm:$0xff]
    %v596 = vld [vmem:[%s5 + $0x60] sm:$0xff]
    %v597 = vld [vmem:[%s5 + $0x68] sm:$0xff]
    %v598 = vld [vmem:[%s5 + $0x70] sm:$0xff]
    %v599 = vld [vmem:[%s5 + $0x78] sm:$0xff]
    %v600 = vld [vmem:[%s5 + $0x80] sm:$0xff]
    %v601 = vld [vmem:[%s5 + $0x88] sm:$0xff]
    %v602 = vld [vmem:[%s5 + $0x90] sm:$0xff]
    %v603 = vld [vmem:[%s5 + $0x98] sm:$0xff]
    %v604 = vld [vmem:[%s5 + $0xa0] sm:$0xff]
    %v605 = vld [vmem:[%s5 + $0xa8] sm:$0xff]
    %v606 = vld [vmem:[%s5 + $0xb0] sm:$0xff]
    %v607 = vld [vmem:[%s5 + $0xb8] sm:$0xff]
    %v608 = vld [vmem:[%s5 + $0xc0] sm:$0xff]
    %v609 = vld [vmem:[%s5 + $0xc8] sm:$0xff]
    %v610 = vld [vmem:[%s5 + $0xd0] sm:$0xff]
    %v611 = vld [vmem:[%s5 + $0xd8] sm:$0xff]
    %v612 = vld [vmem:[%s5 + $0xe0] sm:$0xff]
    %v613 = vld [vmem:[%s5 + $0xe8] sm:$0xff]
    %v614 = vld [vmem:[%s5 + $0xf0] sm:$0xff]
    %v615 = vld [vmem:[%s5 + $0xf8] sm:$0xff]
    %v616 = vld [vmem:[%s6] sm:$0x1]
    %v618 = vlaneseq
    %v619 = vshrl.u32 %v618, 7
    %v620 = vsub.s32 0, %v619
    %v621 = vrot.slane %v616, %v620
    %623 = vmatprep.subr.mxu0 0.0
    %624 = vmatpush1.msra.mxu0 %v599
    %625 = vmatprep.subr.mxu0 0.0
    %626 = vmatpush1.msra.mxu0 %v598
    %627 = vmatprep.subr.mxu0 0.0
    %628 = vmatpush1.msra.mxu0 %v597
    %629 = vmatprep.subr.mxu0 0.0
    %630 = vmatpush1.msra.mxu0 %v596
    %631 = vmatprep.subr.mxu0 0.0
    %632 = vmatpush1.msra.mxu0 %v595
    %633 = vmatprep.subr.mxu0 0.0
    %634 = vmatpush1.msra.mxu0 %v594
    %635 = vmatprep.subr.mxu0 0.0
    %636 = vmatpush1.msra.mxu0 %v593
    %637 = vmatprep.subr.mxu0 0.0
    %638 = vmatpush1.msra.mxu0 %v592
    %639 = vmatprep.subr.mxu0 0.0
    %640 = vmatpush1.msra.mxu0 %v591
    %641 = vmatprep.subr.mxu0 0.0
    %642 = vmatpush1.msra.mxu0 %v590
    %643 = vmatprep.subr.mxu0 0.0
    %644 = vmatpush1.msra.mxu0 %v589
    %645 = vmatprep.subr.mxu0 0.0
    %646 = vmatpush1.msra.mxu0 %v588
    %647 = vmatprep.subr.mxu0 0.0
    %648 = vmatpush1.msra.mxu0 %v587
    %649 = vmatprep.subr.mxu0 0.0
    %650 = vmatpush1.msra.mxu0 %v586
    %651 = vmatprep.subr.mxu0 0.0
    %652 = vmatpush1.msra.mxu0 %v585
    %653 = vmatprep.subr.mxu0 0.0
    %654 = vmatpush1.msra.mxu0 %v584
    %655 = vmatprep.subr.mxu0 0.0
    %656 = vmatpush2.msra.mxu0 %v615
    %657 = vmatprep.subr.mxu0 0.0
    %658 = vmatpush2.msra.mxu0 %v614
    %659 = vmatprep.subr.mxu0 0.0
    %660 = vmatpush2.msra.mxu0 %v613
    %661 = vmatprep.subr.mxu0 0.0
    %662 = vmatpush2.msra.mxu0 %v612
    %663 = vmatprep.subr.mxu0 0.0
    %664 = vmatpush2.msra.mxu0 %v611
    %665 = vmatprep.subr.mxu0 0.0
    %666 = vmatpush2.msra.mxu0 %v610
    %667 = vmatprep.subr.mxu0 0.0
    %668 = vmatpush2.msra.mxu0 %v609
    %669 = vmatprep.subr.mxu0 0.0
    %670 = vmatpush2.msra.mxu0 %v608
    %671 = vmatprep.subr.mxu0 0.0
    %672 = vmatpush2.msra.mxu0 %v607
    %673 = vmatprep.subr.mxu0 0.0
    %674 = vmatpush2.msra.mxu0 %v606
    %675 = vmatprep.subr.mxu0 0.0
    %676 = vmatpush2.msra.mxu0 %v605
    %677 = vmatprep.subr.mxu0 0.0
    %678 = vmatpush2.msra.mxu0 %v604
    %679 = vmatprep.subr.mxu0 0.0
    %680 = vmatpush2.msra.mxu0 %v603
    %681 = vmatprep.subr.mxu0 0.0
    %682 = vmatpush2.msra.mxu0 %v602
    %683 = vmatprep.subr.mxu0 0.0
    %684 = vmatpush2.msra.mxu0 %v601
    %685 = vmatprep.subr.mxu0 0.0
    %686 = vmatpush2.msra.mxu0 %v600
    %687 = vmatprep.mubr.f32.mxu0 %v553
    %688 = vmatmul.mubr.f32.gmra.mxu0 %v552
    %v689 = vpop.f32.mrf.mxu0
    %v690 = vadd.f32 %v621, %v689
    %v691 = vpop.f32.mrf.mxu0
    %692 = vmatprep.mubr.f32.mxu0 %v555
    %693 = vmatmul.mubr.f32.gmra.mxu0 %v554
    %v694 = vpop.f32.mrf.mxu0
    %v695 = vadd.f32 %v621, %v694
    %v696 = vpop.f32.mrf.mxu0
    %697 = vmatprep.mubr.f32.mxu0 %v557
    %698 = vmatmul.mubr.f32.gmra.mxu0 %v556
    %v699 = vpop.f32.mrf.mxu0
    %v700 = vadd.f32 %v621, %v699
    %v701 = vpop.f32.mrf.mxu0
    %702 = vmatprep.mubr.f32.mxu0 %v559
    %703 = vmatmul.mubr.f32.gmra.mxu0 %v558
    %v704 = vpop.f32.mrf.mxu0
    %v705 = vadd.f32 %v621, %v704
    %v706 = vpop.f32.mrf.mxu0
    %707 = vmatprep.mubr.f32.mxu0 %v561
    %708 = vmatmul.mubr.f32.gmra.mxu0 %v560
    %v709 = vpop.f32.mrf.mxu0
    %v710 = vadd.f32 %v621, %v709
    %v711 = vpop.f32.mrf.mxu0
    %712 = vmatprep.mubr.f32.mxu0 %v563
    %713 = vmatmul.mubr.f32.gmra.mxu0 %v562
    %v714 = vpop.f32.mrf.mxu0
    %v715 = vadd.f32 %v621, %v714
    %v716 = vpop.f32.mrf.mxu0
    %717 = vmatprep.mubr.f32.mxu0 %v565
    %718 = vmatmul.mubr.f32.gmra.mxu0 %v564
    %v719 = vpop.f32.mrf.mxu0
    %v720 = vadd.f32 %v621, %v719
    %v721 = vpop.f32.mrf.mxu0
    %722 = vmatprep.mubr.f32.mxu0 %v567
    %723 = vmatmul.mubr.f32.gmra.mxu0 %v566
    %v724 = vpop.f32.mrf.mxu0
    %v725 = vadd.f32 %v621, %v724
    %v726 = vpop.f32.mrf.mxu0
    %727 = vmatprep.mubr.f32.mxu0 %v569
    %728 = vmatmul.mubr.f32.gmra.mxu0 %v568
    %v729 = vpop.f32.mrf.mxu0
    %v730 = vadd.f32 %v621, %v729
    %v731 = vpop.f32.mrf.mxu0
    %732 = vmatprep.mubr.f32.mxu0 %v571
    %733 = vmatmul.mubr.f32.gmra.mxu0 %v570
    %v734 = vpop.f32.mrf.mxu0
    %v735 = vadd.f32 %v621, %v734
    %v736 = vpop.f32.mrf.mxu0
    %737 = vmatprep.mubr.f32.mxu0 %v573
    %738 = vmatmul.mubr.f32.gmra.mxu0 %v572
    %v739 = vpop.f32.mrf.mxu0
    %v740 = vadd.f32 %v621, %v739
    %v741 = vpop.f32.mrf.mxu0
    %742 = vmatprep.mubr.f32.mxu0 %v575
    %743 = vmatmul.mubr.f32.gmra.mxu0 %v574
    %v744 = vpop.f32.mrf.mxu0
    %v745 = vadd.f32 %v621, %v744
    %v746 = vpop.f32.mrf.mxu0
    %747 = vmatprep.mubr.f32.mxu0 %v577
    %748 = vmatmul.mubr.f32.gmra.mxu0 %v576
    %v749 = vpop.f32.mrf.mxu0
    %v750 = vadd.f32 %v621, %v749
    %v751 = vpop.f32.mrf.mxu0
    %752 = vmatprep.mubr.f32.mxu0 %v579
    %753 = vmatmul.mubr.f32.gmra.mxu0 %v578
    %v754 = vpop.f32.mrf.mxu0
    %v755 = vadd.f32 %v621, %v754
    %v756 = vpop.f32.mrf.mxu0
    %757 = vmatprep.mubr.f32.mxu0 %v581
    %758 = vmatmul.mubr.f32.gmra.mxu0 %v580
    %v759 = vpop.f32.mrf.mxu0
    %v760 = vadd.f32 %v621, %v759
    %v761 = vpop.f32.mrf.mxu0
    %762 = vmatprep.mubr.f32.mxu0 %v583
    %763 = vmatmul.mubr.f32.gmra.mxu0 %v582
    %v764 = vpop.f32.mrf.mxu0
    %v765 = vadd.f32 %v621, %v764
    %v766 = vpop.f32.mrf.mxu0
    %767 = vdwg.mxu0
    %vm768 = vcmask 64512
    %769 = vst.msk [vmem:[#allocation5] sm:$0xff] %vm768, %v690
    %770 = vst.msk [vmem:[#allocation5 + $0x8] sm:$0xff] %vm768, %v695
    %771 = vst.msk [vmem:[#allocation5 + $0x10] sm:$0xff] %vm768, %v700
    %772 = vst.msk [vmem:[#allocation5 + $0x18] sm:$0xff] %vm768, %v705
    %773 = vst.msk [vmem:[#allocation5 + $0x20] sm:$0xff] %vm768, %v710
    %774 = vst.msk [vmem:[#allocation5 + $0x28] sm:$0xff] %vm768, %v715
    %775 = vst.msk [vmem:[#allocation5 + $0x30] sm:$0xff] %vm768, %v720
    %776 = vst.msk [vmem:[#allocation5 + $0x38] sm:$0xff] %vm768, %v725
    %777 = vst.msk [vmem:[#allocation5 + $0x40] sm:$0xff] %vm768, %v730
    %778 = vst.msk [vmem:[#allocation5 + $0x48] sm:$0xff] %vm768, %v735
    %779 = vst.msk [vmem:[#allocation5 + $0x50] sm:$0xff] %vm768, %v740
    %780 = vst.msk [vmem:[#allocation5 + $0x58] sm:$0xff] %vm768, %v745
    %781 = vst.msk [vmem:[#allocation5 + $0x60] sm:$0xff] %vm768, %v750
    %782 = vst.msk [vmem:[#allocation5 + $0x68] sm:$0xff] %vm768, %v755
    %783 = vst.msk [vmem:[#allocation5 + $0x70] sm:$0xff] %vm768, %v760
    %784 = vst.msk [vmem:[#allocation5 + $0x78] sm:$0xff] %vm768, %v765
    // Predicated region
    $region34: #{small_pinn_net.1} parent=1 // pred_check
      _
    $region35: #{small_pinn_net.1} parent=1 // pred_check_branch
      %786 = sbr.rel (0) target = $region37
    $region36: #{small_pinn_net.1} parent=1 // pred_region
      %s788 = ssub.s32 2048, 128
      %789 = vsyncadd [#allocation4], %s788
      %s790 = sshll.u32 [#allocation5], 4
      %s791 = int_to_ptr.vmem [resolvable:$true] %s790
      %796 = dma.vmem_to_hbm [thread:$0]  %s791, 128, %s7, [#allocation4], 128, 128, 8
    $region37: #{small_pinn_net.1} parent=1 // pred_fallthru
      _
    // Predicated region
    $region38: #{small_pinn_net.1} parent=1 // pred_check
      _
    $region39: #{small_pinn_net.1} parent=1 // pred_check_branch
      %798 = sbr.rel (0) target = $region41
    $region40: #{small_pinn_net.1} parent=1 // pred_region
      %799 = dma.done [#allocation4], 2048
    $region41: #{small_pinn_net.1} parent=1 // pred_fallthru
      _
    %800 = vsyncpa [#allocation3], 1
    %801 = vsyncpa [#allocation4], 1

</llo_original>
